<compile_context>
chip_gen: v7x
topology: tpu7x:2x2x1
jax: 0.10.0
libtpu: 0.0.40
codegen_flags: <defaults>
</compile_context>

<pallas_src>
import numpy as np
import jax
import jax.numpy as jnp
from jax.experimental import pallas as pl
from jax.experimental.pallas import tpu as pltpu


# ----------------------------- config ("opt") -------------------------------
class Opt:
    polarities_dim = 3


OPT = Opt()


# ------------------------------- kernel -------------------------------------
def _myloss_kernel(x_ref, pol_ref, s_ref, out_ref):
    """One batch tile per grid step.

    x_ref   : (TB, D)  inputs tile (native dtype; up-cast in-kernel)
    pol_ref : (TB, 1)  int32 polarity tile (padded rows carry value P -> match nothing)
    s_ref   : (P, D)   standar_score, resident across all grid steps
    out_ref : (1, 1)   f32 accumulator (same block every step -> stays in VMEM)
    """
    i = pl.program_id(0)
    s = s_ref[...].astype(jnp.float32)                        # (P, D)
    P = s.shape[0]

    # ---- init accumulator with the (input-independent) cos pair terms, once ----
    @pl.when(i == 0)
    def _():
        g = jax.lax.dot_general(s, s, (((1,), (1,)), ((), ())),
                                preferred_element_type=jnp.float32)    # (P, P) gram
        s2_row = jnp.sum(s * s, axis=1, keepdims=True)                 # (P, 1) ||s_i||^2
        row_p = jax.lax.broadcasted_iota(jnp.int32, (P, P), 0)
        col_p = jax.lax.broadcasted_iota(jnp.int32, (P, P), 1)
        diag_col = jnp.sum(jnp.where(row_p == col_p, g, 0.0),
                           axis=0, keepdims=True)                      # (1, P) ||s_j||^2
        # cos_(a, b) = <a,b> / sqrt(||a||^2) * sqrt(||b||^2)   (precedence kept from PyTorch)
        cosm = g * jax.lax.rsqrt(s2_row) * jnp.sqrt(diag_col)          # (P, P)
        cos_sq = jnp.where(col_p > row_p, cosm * cosm, 0.0)            # pairs (0,1),(0,2),(1,2)
        out_ref[...] = jnp.sum(jnp.sum(cos_sq, axis=1, keepdims=True),
                               axis=0, keepdims=True)                  # (1, 1)

    # ---- per-sample selected standard vector (P broadcast selects on the VPU) ----
    x = x_ref[...].astype(jnp.float32)                         # (TB, D)
    pol = pol_ref[...]                                         # (TB, 1) int32
    s_sel = jnp.zeros_like(x)
    for p in range(P):                                         # P is static (3)
        s_sel = jnp.where(pol == p, s[p:p + 1, :], s_sel)      # (TB,1) pred, (1,D) row

    diff = x - s_sel                                           # (TB, D)
    partial = jnp.sum(jnp.sum(diff * diff, axis=1, keepdims=True),
                      axis=0, keepdims=True)                   # (1, 1)
    out_ref[...] += partial


# ------------------------------ wrapper --------------------------------------
def myloss(inputs, polarity, standar_score, *, tb=512):
    """Fused Pallas implementation of Myloss.forward. Returns a scalar loss (f32)."""
    assert tb % 8 == 0, "batch tile must be sublane (8) aligned"
    B, D = inputs.shape
    P = standar_score.shape[0]

    pol = polarity.reshape(B, 1).astype(jnp.int32)

    if B <= tb:
        TB = B                            # single tile: block shape == full array dims
        x_p, pol_p = inputs, pol
    else:
        TB = tb
        B_pad = ((B + TB - 1) // TB) * TB
        if B_pad != B:
            # Padded rows: x = 0 and polarity = P (matches no class) -> contribute exactly 0.
            x_p = jnp.pad(inputs, ((0, B_pad - B), (0, 0)))
            pol_p = jnp.pad(pol, ((0, B_pad - B), (0, 0)), constant_values=P)
        else:
            x_p, pol_p = inputs, pol
    nb = x_p.shape[0] // TB

    out = pl.pallas_call(
        _myloss_kernel,
        out_shape=jax.ShapeDtypeStruct((1, 1), jnp.float32),
        grid=(nb,),
        in_specs=[
            pl.BlockSpec((TB, D), lambda i: (i, 0)),    # inputs tile   (double-buffered stream)
            pl.BlockSpec((TB, 1), lambda i: (i, 0)),    # polarity tile
            pl.BlockSpec((P, D), lambda i: (0, 0)),     # standar_score resident in VMEM
        ],
        out_specs=pl.BlockSpec((1, 1), lambda i: (0, 0)),   # resident scalar accumulator
        compiler_params=pltpu.CompilerParams(
            dimension_semantics=("arbitrary",)),
    )(x_p, pol_p, standar_score)
    return out[0, 0]


# --------------------------- pure-JAX reference -------------------------------
def reference_myloss(inputs, polarity, standar_score, polarities_dim):
    """Direct mirror of the PyTorch math."""
    ih = jnp.repeat(inputs[:, None, :], polarities_dim, axis=1)         # (B, P, D)
    loss_all = ih - standar_score[None]                                 # (B, P, D)
    loss_all_sqr = jnp.einsum('bpd,bqd->bpq', loss_all, loss_all)       # (B, P, P)
    loss_all_sqr_eye = jnp.diagonal(loss_all_sqr, axis1=-2, axis2=-1)   # (B, P)
    mask_min = jax.nn.one_hot(polarity, polarities_dim, dtype=jnp.float32)
    loss_min = jnp.sum(jnp.sum(loss_all_sqr_eye * mask_min, axis=-1), axis=-1)

    def cos_(a, b):
        return (jnp.sum(a * b, axis=-1)
                / jnp.sqrt(jnp.sum(a * a, axis=-1))
                * jnp.sqrt(jnp.sum(b * b, axis=-1)))

    c01 = cos_(standar_score[0], standar_score[1])
    c02 = cos_(standar_score[0], standar_score[2])
    c12 = cos_(standar_score[1], standar_score[2])
    return loss_min + c01 * c01 + c02 * c02 + c12 * c12


# ----------------------------------- main -------------------------------------
if __name__ == "__main__":
    P = OPT.polarities_dim
    key = jax.random.PRNGKey(0)
    k1, k2, k3, k4, k5 = jax.random.split(key, 5)

    # Case 1: module-sized toy problem (single tile path).
    B, D = 2, 32
    inputs = jax.random.normal(k1, (B, D), jnp.float32)
    standar_score = jax.random.normal(k2, (P, D), jnp.float32)
    polarity = jax.random.randint(k3, (B,), 0, P)

    loss = jax.block_until_ready(myloss(inputs, polarity, standar_score))
    ref = reference_myloss(inputs, polarity, standar_score, P)
    np.testing.assert_allclose(np.asarray(loss), np.asarray(ref), rtol=1e-3, atol=1e-3)

    # Case 2: exercises the batch grid + padding + resident accumulator path.
    B2 = 10
    inputs2 = jax.random.normal(k4, (B2, D), jnp.float32)
    polarity2 = jax.random.randint(k5, (B2,), 0, P)
    loss2 = jax.block_until_ready(myloss(inputs2, polarity2, standar_score, tb=8))
    ref2 = reference_myloss(inputs2, polarity2, standar_score, P)
    np.testing.assert_allclose(np.asarray(loss2), np.asarray(ref2), rtol=1e-3, atol=1e-3)

    print("KERNEL_OK")
</pallas_src>

<mosaic_0001>
module attributes {stable_mosaic.version = 11 : i64} {
  func.func @_myloss_kernel(%arg0: i32, %arg1: memref<2x32xf32, #tpu.memory_space<vmem>>, %arg2: memref<2x1xi32, #tpu.memory_space<vmem>>, %arg3: memref<3x32xf32, #tpu.memory_space<vmem>>, %arg4: memref<1x1xf32, #tpu.memory_space<vmem>>) attributes {dimension_semantics = [#tpu.dimension_semantics<arbitrary>], iteration_bounds = array<i64: 1>, scalar_prefetch = 0 : i64, scratch_operands = 0 : i64, tpu.core_type = #tpu.core_type<tc>, window_params = [{transform_indices = @transform_0, window_bounds = array<i64: 2, 32>}, {transform_indices = @transform_1, window_bounds = array<i64: 2, 1>}, {pipeline_mode = #tpu.pipeline_mode<synchronous>, transform_indices = @transform_2, window_bounds = array<i64: 3, 32>}, {pipeline_mode = #tpu.pipeline_mode<synchronous>, transform_indices = @transform_3, window_bounds = array<i64: 1, 1>}]} {
    %c0 = arith.constant 0 : index
    %c0_0 = arith.constant 0 : index
    %0 = vector.load %arg3[%c0, %c0_0] : memref<3x32xf32, #tpu.memory_space<vmem>>, vector<3x32xf32>
    %c0_i32 = arith.constant 0 : i32
    %1 = arith.cmpi eq, %arg0, %c0_i32 : i32
    %2 = arith.extui %1 : i1 to i32
    %c0_i32_1 = arith.constant 0 : i32
    %3 = arith.cmpi ne, %2, %c0_i32_1 : i32
    scf.if %3 {
      %cst_13 = arith.constant dense<0.000000e+00> : vector<3x3xf32>
      %40 = tpu.matmul %0, %0, %cst_13 {dimension_numbers = #tpu.dot_dimension_numbers<[1], [1], [0], [0], [0, 0, 1, 0], [], []>} : vector<3x32xf32>, vector<3x32xf32>, vector<3x3xf32> -> vector<3x3xf32>
      %41 = arith.mulf %0, %0 : vector<3x32xf32>
      %cst_14 = arith.constant dense<0.000000e+00> : vector<3xf32>
      %42 = vector.multi_reduction <add>, %41, %cst_14 [1] : vector<3x32xf32> to vector<3xf32>
      %43 = vector.shape_cast %42 : vector<3xf32> to vector<3x1xf32>
      %44 = tpu.iota {dimensions = array<i32: 0>} : vector<3x3xi32>
      %45 = tpu.iota {dimensions = array<i32: 1>} : vector<3x3xi32>
      %46 = arith.cmpi eq, %44, %45 : vector<3x3xi32>
      %cst_15 = arith.constant 0.000000e+00 : f32
      %47 = vector.broadcast %cst_15 : f32 to vector<3x3xf32>
      %48 = arith.select %46, %40, %47 : vector<3x3xi1>, vector<3x3xf32>
      %cst_16 = arith.constant dense<0.000000e+00> : vector<3xf32>
      %49 = vector.multi_reduction <add>, %48, %cst_16 [0] : vector<3x3xf32> to vector<3xf32>
      %50 = vector.shape_cast %49 : vector<3xf32> to vector<1x3xf32>
      %51 = math.rsqrt %43 : vector<3x1xf32>
      %52 = vector.broadcast %51 : vector<3x1xf32> to vector<3x3xf32>
      %53 = arith.mulf %40, %52 : vector<3x3xf32>
      %54 = math.sqrt %50 : vector<1x3xf32>
      %55 = vector.broadcast %54 : vector<1x3xf32> to vector<3x3xf32>
      %56 = arith.mulf %53, %55 : vector<3x3xf32>
      %57 = arith.cmpi sgt, %45, %44 : vector<3x3xi32>
      %58 = arith.mulf %56, %56 : vector<3x3xf32>
      %cst_17 = arith.constant 0.000000e+00 : f32
      %59 = vector.broadcast %cst_17 : f32 to vector<3x3xf32>
      %60 = arith.select %57, %58, %59 : vector<3x3xi1>, vector<3x3xf32>
      %cst_18 = arith.constant dense<0.000000e+00> : vector<3xf32>
      %61 = vector.multi_reduction <add>, %60, %cst_18 [1] : vector<3x3xf32> to vector<3xf32>
      %62 = vector.shape_cast %61 : vector<3xf32> to vector<3x1xf32>
      %cst_19 = arith.constant dense<0.000000e+00> : vector<1xf32>
      %63 = vector.multi_reduction <add>, %62, %cst_19 [0] : vector<3x1xf32> to vector<1xf32>
      %64 = vector.shape_cast %63 : vector<1xf32> to vector<1x1xf32>
      %c0_20 = arith.constant 0 : index
      %c0_21 = arith.constant 0 : index
      %65 = vector.load %arg4[%c0_20, %c0_21] : memref<1x1xf32, #tpu.memory_space<vmem>>, vector<1x1xf32>
      tpu.vector_store %arg4[%c0_20, %c0_21], %64 {strides = array<i32>} : memref<1x1xf32, #tpu.memory_space<vmem>>, vector<1x1xf32>,
    } else {
    }
    %c0_2 = arith.constant 0 : index
    %c0_3 = arith.constant 0 : index
    %4 = vector.load %arg1[%c0_2, %c0_3] : memref<2x32xf32, #tpu.memory_space<vmem>>, vector<2x32xf32>
    %c0_4 = arith.constant 0 : index
    %c0_5 = arith.constant 0 : index
    %5 = vector.load %arg2[%c0_4, %c0_5] : memref<2x1xi32, #tpu.memory_space<vmem>>, vector<2x1xi32>
    %cst = arith.constant 0.000000e+00 : f32
    %6 = vector.broadcast %cst : f32 to vector<2x32xf32>
    %c0_i32_6 = arith.constant 0 : i32
    %7 = vector.broadcast %c0_i32_6 : i32 to vector<2x1xi32>
    %8 = arith.cmpi eq, %5, %7 : vector<2x1xi32>
    %9 = vector.extract_strided_slice %0 {offsets = [0, 0], sizes = [1, 32], strides = [1, 1]} : vector<3x32xf32> to vector<1x32xf32>
    %10 = vector.shape_cast %8 : vector<2x1xi1> to vector<2x1xi1>
    %11 = vector.broadcast %10 : vector<2x1xi1> to vector<2x32xi1>
    %12 = vector.shape_cast %9 : vector<1x32xf32> to vector<1x32xf32>
    %13 = vector.broadcast %12 : vector<1x32xf32> to vector<2x32xf32>
    %14 = arith.select %11, %13, %6 : vector<2x32xi1>, vector<2x32xf32>
    %c1_i32 = arith.constant 1 : i32
    %15 = vector.broadcast %c1_i32 : i32 to vector<2x1xi32>
    %16 = arith.cmpi eq, %5, %15 : vector<2x1xi32>
    %17 = vector.extract_strided_slice %0 {offsets = [1, 0], sizes = [1, 32], strides = [1, 1]} : vector<3x32xf32> to vector<1x32xf32>
    %18 = vector.shape_cast %16 : vector<2x1xi1> to vector<2x1xi1>
    %19 = vector.broadcast %18 : vector<2x1xi1> to vector<2x32xi1>
    %20 = vector.shape_cast %17 : vector<1x32xf32> to vector<1x32xf32>
    %21 = vector.broadcast %20 : vector<1x32xf32> to vector<2x32xf32>
    %22 = arith.select %19, %21, %14 : vector<2x32xi1>, vector<2x32xf32>
    %c2_i32 = arith.constant 2 : i32
    %23 = vector.broadcast %c2_i32 : i32 to vector<2x1xi32>
    %24 = arith.cmpi eq, %5, %23 : vector<2x1xi32>
    %25 = vector.extract_strided_slice %0 {offsets = [2, 0], sizes = [1, 32], strides = [1, 1]} : vector<3x32xf32> to vector<1x32xf32>
    %26 = vector.shape_cast %24 : vector<2x1xi1> to vector<2x1xi1>
    %27 = vector.broadcast %26 : vector<2x1xi1> to vector<2x32xi1>
    %28 = vector.shape_cast %25 : vector<1x32xf32> to vector<1x32xf32>
    %29 = vector.broadcast %28 : vector<1x32xf32> to vector<2x32xf32>
    %30 = arith.select %27, %29, %22 : vector<2x32xi1>, vector<2x32xf32>
    %31 = arith.subf %4, %30 : vector<2x32xf32>
    %32 = arith.mulf %31, %31 : vector<2x32xf32>
    %cst_7 = arith.constant dense<0.000000e+00> : vector<2xf32>
    %33 = vector.multi_reduction <add>, %32, %cst_7 [1] : vector<2x32xf32> to vector<2xf32>
    %34 = vector.shape_cast %33 : vector<2xf32> to vector<2x1xf32>
    %cst_8 = arith.constant dense<0.000000e+00> : vector<1xf32>
    %35 = vector.multi_reduction <add>, %34, %cst_8 [0] : vector<2x1xf32> to vector<1xf32>
    %36 = vector.shape_cast %35 : vector<1xf32> to vector<1x1xf32>
    %c0_9 = arith.constant 0 : index
    %c0_10 = arith.constant 0 : index
    %37 = vector.load %arg4[%c0_9, %c0_10] : memref<1x1xf32, #tpu.memory_space<vmem>>, vector<1x1xf32>
    %38 = arith.addf %37, %36 : vector<1x1xf32>
    %c0_11 = arith.constant 0 : index
    %c0_12 = arith.constant 0 : index
    %39 = vector.load %arg4[%c0_11, %c0_12] : memref<1x1xf32, #tpu.memory_space<vmem>>, vector<1x1xf32>
    tpu.vector_store %arg4[%c0_11, %c0_12], %38 {strides = array<i32>} : memref<1x1xf32, #tpu.memory_space<vmem>>, vector<1x1xf32>,
    return
  }
  func.func @transform_0(%arg0: i32) -> (i32, i32) {
    %c0_i32 = arith.constant 0 : i32
    %c0_i32_0 = arith.constant 0 : i32
    return %arg0, %c0_i32 : i32, i32
  }
  func.func @transform_1(%arg0: i32) -> (i32, i32) {
    %c0_i32 = arith.constant 0 : i32
    %c0_i32_0 = arith.constant 0 : i32
    return %arg0, %c0_i32 : i32, i32
  }
  func.func @transform_2(%arg0: i32) -> (i32, i32) {
    %c0_i32 = arith.constant 0 : i32
    %c0_i32_0 = arith.constant 0 : i32
    %c0_i32_1 = arith.constant 0 : i32
    return %c0_i32, %c0_i32_0 : i32, i32
  }
  func.func @transform_3(%arg0: i32) -> (i32, i32) {
    %c0_i32 = arith.constant 0 : i32
    %c0_i32_0 = arith.constant 0 : i32
    %c0_i32_1 = arith.constant 0 : i32
    return %c0_i32, %c0_i32_0 : i32, i32
  }
}

</mosaic_0001>

<llo_original>
// kernel: tpu_custom_call.1
$region0: #{tpu_custom_call.1}
  #allocation0 [shape = 'u32[]', space=smem, size = 0x4, offset = 0x4, fixed_abs, tag = 'smem constant byte address 0x4 - core index']
  #allocation1 [shape = 'u32[144,128]{1,0:T(1,128)}', space=vmem, size = 0x12000, scoped, tag = 'internal scratch']
  %s0 = inlined_call_operand.vmem [shape: f32[2,32], index: 0, kind: input, shape index: {}]
  %s1 = inlined_call_operand.vmem [shape: s32[2,1], index: 1, kind: input, shape index: {}]
  %s2 = inlined_call_operand.vmem [shape: f32[3,32], index: 2, kind: input, shape index: {}]
  %s3 = inlined_call_operand.hbm [shape: f32[1,1], index: 3, kind: output, shape index: {}]
  %s4 = sld [smem:[#allocation0]]
  $region26: #{tpu_custom_call.1} parent=0
    _
  %s6 = ssub.s32 1, %s4
  %s7 = scalar_select 0, %s6, %s4
  $region1: #{tpu_custom_call.1} parent=0
    #allocation2 [shape = 'u8[512]{0}', space=vmem, size = 0x400, scoped, tag = 'output window, operand 0, single buffered']
    #allocation3 [shape = 's32[1]{0}', space=sflag, size = 0x4, scoped, tag = 'scoped memory for tpu_custom_call.1']
    %8 = vsyncpa [#allocation3], 0
    // Predicated region
    $region2: #{tpu_custom_call.1} parent=1 // pred_check
      _
    $region3: #{tpu_custom_call.1} parent=1 // pred_check_branch
      %10 = sbr.rel (0) target = $region5
    $region4: #{tpu_custom_call.1} parent=1 // pred_region
      _
    $region5: #{tpu_custom_call.1} parent=1 // pred_fallthru
      _
    // Predicated region
    $region6: #{tpu_custom_call.1} parent=1 // pred_check
      _
    $region7: #{tpu_custom_call.1} parent=1 // pred_check_branch
      %12 = sbr.rel (0) target = $region9
    $region8: #{tpu_custom_call.1} parent=1 // pred_region
      _
    $region9: #{tpu_custom_call.1} parent=1 // pred_fallthru
      _
    // Predicated region
    $region10: #{tpu_custom_call.1} parent=1 // pred_check
      _
    $region11: #{tpu_custom_call.1} parent=1 // pred_check_branch
      %14 = sbr.rel (0) target = $region13
    $region12: #{tpu_custom_call.1} parent=1 // pred_region
      _
    $region13: #{tpu_custom_call.1} parent=1 // pred_fallthru
      _
    %v15 = vld [vmem:[%s2] sm:$0x7]
    %p16 = scmp.eq.s32.totalorder 0, 0
    // Predicated region
    $region14: #{tpu_custom_call.1} parent=1 // pred_check
      %p17 = pneg %p16
    $region15: #{tpu_custom_call.1} parent=1 // pred_check_branch
      %19 = sbr.rel (%p17) target = $region17
    $region16: #{tpu_custom_call.1} parent=1 // pred_region
      %vm20 = vcmask 261120
      %v22 = vsel %vm20, %v15, 0
      %24 = vmatprep.subr.mxu0 0.0
      %25 = vmatpush1.xpose.msra.mxu0 %v22
      %26 = vmatprep.subr.mxu0 0.0
      %27 = vmatpush1.xpose.msra.mxu0 0.0
      %28 = vmatprep.subr.mxu0 0.0
      %29 = vmatpush1.xpose.msra.mxu0 0.0
      %30 = vmatprep.subr.mxu0 0.0
      %31 = vmatpush1.xpose.msra.mxu0 0.0
      %32 = vmatprep.subr.mxu0 0.0
      %33 = vmatpush1.xpose.msra.mxu0 0.0
      %34 = vmatprep.subr.mxu0 0.0
      %35 = vmatpush1.xpose.msra.mxu0 0.0
      %36 = vmatprep.subr.mxu0 0.0
      %37 = vmatpush1.xpose.msra.mxu0 0.0
      %38 = vmatprep.subr.mxu0 0.0
      %39 = vmatpush1.xpose.msra.mxu0 0.0
      %40 = vmatprep.subr.mxu0 0.0
      %41 = vmatpush1.xpose.msra.mxu0 0.0
      %42 = vmatprep.subr.mxu0 0.0
      %43 = vmatpush1.xpose.msra.mxu0 0.0
      %44 = vmatprep.subr.mxu0 0.0
      %45 = vmatpush1.xpose.msra.mxu0 0.0
      %46 = vmatprep.subr.mxu0 0.0
      %47 = vmatpush1.xpose.msra.mxu0 0.0
      %48 = vmatprep.subr.mxu0 0.0
      %49 = vmatpush1.xpose.msra.mxu0 0.0
      %50 = vmatprep.subr.mxu0 0.0
      %51 = vmatpush1.xpose.msra.mxu0 0.0
      %52 = vmatprep.subr.mxu0 0.0
      %53 = vmatpush1.xpose.msra.mxu0 0.0
      %54 = vmatprep.subr.mxu0 0.0
      %55 = vmatpush1.xpose.msra.mxu0 0.0
      %56 = vmatprep.subr.mxu0 0.0
      %57 = vmatpush1.xpose.msra.mxu0 0.0
      %58 = vmatprep.subr.mxu0 0.0
      %59 = vmatpush1.xpose.msra.mxu0 0.0
      %60 = vmatprep.subr.mxu0 0.0
      %61 = vmatpush1.xpose.msra.mxu0 0.0
      %62 = vmatprep.subr.mxu0 0.0
      %63 = vmatpush1.xpose.msra.mxu0 0.0
      %64 = vmatprep.subr.mxu0 0.0
      %65 = vmatpush1.xpose.msra.mxu0 0.0
      %66 = vmatprep.subr.mxu0 0.0
      %67 = vmatpush1.xpose.msra.mxu0 0.0
      %68 = vmatprep.subr.mxu0 0.0
      %69 = vmatpush1.xpose.msra.mxu0 0.0
      %70 = vmatprep.subr.mxu0 0.0
      %71 = vmatpush1.xpose.msra.mxu0 0.0
      %72 = vmatprep.subr.mxu0 0.0
      %73 = vmatpush1.xpose.msra.mxu0 0.0
      %74 = vmatprep.subr.mxu0 0.0
      %75 = vmatpush1.xpose.msra.mxu0 0.0
      %76 = vmatprep.subr.mxu0 0.0
      %77 = vmatpush1.xpose.msra.mxu0 0.0
      %78 = vmatprep.subr.mxu0 0.0
      %79 = vmatpush1.xpose.msra.mxu0 0.0
      %80 = vmatprep.subr.mxu0 0.0
      %81 = vmatpush1.xpose.msra.mxu0 0.0
      %82 = vmatprep.subr.mxu0 0.0
      %83 = vmatpush1.xpose.msra.mxu0 0.0
      %84 = vmatprep.subr.mxu0 0.0
      %85 = vmatpush1.xpose.msra.mxu0 0.0
      %86 = vmatprep.subr.mxu0 0.0
      %87 = vmatpush1.xpose.msra.mxu0 0.0
      %88 = vmatprep.mubr.f32.mxu0 0.0
      %89 = vmatmul.mubr.f32.gmra.mrb[0].mxu0 %v22
      %v90 = vpop.f32.mrb[0].mxu0
      %v91 = vadd.f32 0.0, %v90
      %v92 = vpop.f32.mrb[0].mxu0
      %93 = vdwg.mxu0
      %v94 = vmul.f32 %v15, %v15
      %vm95 = vcmask 256000
      %v96 = vsel %vm95, %v94, 0.0
      %97 = vadd.xlane.f32.xlu0 %v96
      %v98 = vpop.xlane.xlu0 %97
      %v99 = vlaneseq
      %v100 = vshrl.u32 %v99, 7
      %v101 = vlaneseq
      %v102 = vand.u32 %v101, 127
      %vm103 = vcmp.eq.s32.totalorder %v100, %v102
      %v104 = vsel %vm103, %v91, 0.0
      %vm105 = vcmask 18432
      %v106 = vsel %vm105, %v104, 0.0
      %v107 = vrot.slane %v106, 4
      %v108 = vadd.f32 %v106, %v107
      %v109 = vrot.slane %v108, 2
      %v110 = vadd.f32 %v108, %v109
      %v111 = vrot.slane %v110, 1
      %v112 = vadd.f32 %v110, %v111
      %v113 = vrsqrt.pop %v98
      %v114 = vmul.f32 %v91, %v113
      %v115 = vrsqrt.pop %v112
      %v116 = vmul.f32 %v112, %v115
      %vm117 = vcmp.eq.f32.partialorder %v112, inf
      %v118 = vsel %vm117, %v112, %v116
      %vm119 = vcmp.eq.f32.partialorder %v112, 0.0
      %v120 = vand.u32 %v112, 2147483648
      %v121 = vsel %vm119, %v120, %v118
      %v122 = vmul.f32 %v114, %v121
      %vm123 = vcmp.gt.s32.totalorder %v102, %v100
      %v124 = vmul.f32 %v122, %v122
      %v125 = vsel %vm123, %v124, 0.0
      %v126 = vsel %vm105, %v125, 0.0
      %127 = vadd.xlane.f32.xlu0 %v126
      %v128 = vpop.xlane.xlu0 %127
      %vm129 = vcmask 1042432
      %v130 = vsel %vm129, %v128, 0.0
      %v131 = vrot.slane %v130, 4
      %v132 = vadd.f32 %v130, %v131
      %v133 = vrot.slane %v132, 2
      %v134 = vadd.f32 %v132, %v133
      %v135 = vrot.slane %v134, 1
      %v136 = vadd.f32 %v134, %v135
      %vm137 = vcmask 0
      %138 = vst.msk [vmem:[#allocation2] sm:$0x1] %vm137, %v136
    $region17: #{tpu_custom_call.1} parent=1 // pred_fallthru
      _
    %v139 = vld [vmem:[%s0] sm:$0x3]
    %v140 = vld [vmem:[%s1] sm:$0x3]
    %vm141 = vcmp.eq.s32.totalorder %v140, 0
    %v142 = vsel %vm141, 1, 0
    %143 = vset.pattern.permute.xlu0 0
    %144 = vperm.xlu0 %143, %v142
    %v145 = vpop.permute.xlu0 %144
    %vm146 = vcmp.eq.s32.totalorder %v145, 1
    %v147 = vlaneseq
    %v148 = vshrl.u32 %v147, 7
    %v149 = vsub.s32 0, %v148
    %v150 = vrot.slane %v15, %v149
    %v151 = vsel %vm146, %v150, 0.0
    %vm152 = vcmp.eq.s32.totalorder %v140, 1
    %v153 = vsel %vm152, 1, 0
    %154 = vset.pattern.permute.xlu0 0
    %155 = vperm.xlu0 %154, %v153
    %v156 = vpop.permute.xlu0 %155
    %vm157 = vcmp.eq.s32.totalorder %v156, 1
    %v158 = vlaneseq
    %v159 = vshrl.u32 %v158, 7
    %v160 = vsub.s32 1, %v159
    %v161 = vrot.slane %v15, %v160
    %v162 = vsel %vm157, %v161, %v151
    %vm163 = vcmp.eq.s32.totalorder %v140, 2
    %v164 = vsel %vm163, 1, 0
    %165 = vset.pattern.permute.xlu0 0
    %166 = vperm.xlu0 %165, %v164
    %v167 = vpop.permute.xlu0 %166
    %vm168 = vcmp.eq.s32.totalorder %v167, 1
    %v169 = vlaneseq
    %v170 = vshrl.u32 %v169, 7
    %v171 = vsub.s32 2, %v170
    %v172 = vrot.slane %v15, %v171
    %v173 = vsel %vm168, %v172, %v162
    %v174 = vsub.f32 %v139, %v173
    %v175 = vmul.f32 %v174, %v174
    %vm176 = vcmask 254976
    %v177 = vsel %vm176, %v175, 0.0
    %178 = vadd.xlane.f32.xlu0 %v177
    %v179 = vpop.xlane.xlu0 %178
    %vm180 = vcmask 1041408
    %v181 = vsel %vm180, %v179, 0.0
    %v182 = vrot.slane %v181, 4
    %v183 = vadd.f32 %v181, %v182
    %v184 = vrot.slane %v183, 2
    %v185 = vadd.f32 %v183, %v184
    %v186 = vrot.slane %v185, 1
    %v187 = vadd.f32 %v185, %v186
    %v188 = vld [vmem:[#allocation2] sm:$0x1]
    %v189 = vadd.f32 %v188, %v187
    %vm190 = vcmask 0
    %191 = vst.msk [vmem:[#allocation2] sm:$0x1] %vm190, %v189
    // Predicated region
    $region18: #{tpu_custom_call.1} parent=1 // pred_check
      _
    $region19: #{tpu_custom_call.1} parent=1 // pred_check_branch
      %193 = sbr.rel (0) target = $region21
    $region20: #{tpu_custom_call.1} parent=1 // pred_region
      %s195 = ssub.s32 16, 16
      %196 = vsyncadd [#allocation3], %s195
      %s198 = sshll.u32 [#allocation2], 4
      %s199 = int_to_ptr.vmem [resolvable:$true] %s198
      %201 = dma.vmem_to_hbm [thread:$0]  %s199, 16, %s3, [#allocation3]
    $region21: #{tpu_custom_call.1} parent=1 // pred_fallthru
      _
    // Predicated region
    $region22: #{tpu_custom_call.1} parent=1 // pred_check
      _
    $region23: #{tpu_custom_call.1} parent=1 // pred_check_branch
      %203 = sbr.rel (0) target = $region25
    $region24: #{tpu_custom_call.1} parent=1 // pred_region
      %204 = dma.done [#allocation3], 16
    $region25: #{tpu_custom_call.1} parent=1 // pred_fallthru
      _
    %205 = vsyncpa [#allocation3], 1

</llo_original>
